<compile_context>
chip_gen: v6e
topology: v6e:2x2x1
jax: 0.10.0
libtpu: 0.0.40
codegen_flags: <defaults>
</compile_context>

<pallas_src>
import math
from functools import partial

import jax
import jax.numpy as jnp
from jax import lax
from jax.experimental import pallas as pl
from jax.experimental.pallas import tpu as pltpu


# ---------------------------------------------------------------------------
# Linear projection kernel: (M, K) @ (K, N) -> (M, N), rows tiled, f32 acc.
# ---------------------------------------------------------------------------
def _linear_kernel(x_ref, w_ref, o_ref):
    o_ref[...] = jnp.dot(
        x_ref[...], w_ref[...], preferred_element_type=jnp.float32
    ).astype(o_ref.dtype)


def linear(x2d, w, *, tm_max=256):
    M, K = x2d.shape
    Kw, N = w.shape
    assert K == Kw
    tm = M if M <= tm_max else tm_max          # tm_max is a multiple of 8
    grid_m = pl.cdiv(M, tm)
    return pl.pallas_call(
        _linear_kernel,
        out_shape=jax.ShapeDtypeStruct((M, N), x2d.dtype),
        grid_spec=pltpu.PrefetchScalarGridSpec(
            num_scalar_prefetch=0,
            grid=(grid_m,),
            in_specs=[
                pl.BlockSpec((tm, K), lambda i: (i, 0)),
                pl.BlockSpec((K, N), lambda i: (0, 0)),   # weight stays resident
            ],
            out_specs=pl.BlockSpec((tm, N), lambda i: (i, 0)),
        ),
        compiler_params=pltpu.CompilerParams(dimension_semantics=("parallel",)),
    )(x2d, w)


# ---------------------------------------------------------------------------
# Fused scaled-dot-product attention with relative position representations.
# ---------------------------------------------------------------------------
def _attn_rpr_kernel(vlen_ref, q_ref, k_ref, v_ref, pk_ref, pv_ref, o_ref, *, scale):
    bh = pl.program_id(1)

    q = q_ref[0].astype(jnp.float32)       # (tq, Dh)
    k = k_ref[0].astype(jnp.float32)       # (Sk, Dh)
    v = v_ref[0].astype(jnp.float32)       # (Sk, Dh)
    pk = pk_ref[...].astype(jnp.float32)   # (tq, Sk, Dh)
    pv = pv_ref[...].astype(jnp.float32)   # (tq, Sk, Dh)

    # content scores: q @ k^T (contract last dims; no explicit transpose needed)
    scores = lax.dot_general(
        q, k, (((1,), (1,)), ((), ())), preferred_element_type=jnp.float32
    )                                                          # (tq, Sk)
    # relative-position scores: sum_d q[i,d] * pos_k[i,j,d]
    scores = scores + jnp.sum(q[:, None, :] * pk, axis=-1)
    scores = scores * scale

    # masked softmax over the key axis (matches torch: fill -1e6, then softmax)
    tq, Sk = scores.shape
    col = lax.broadcasted_iota(jnp.int32, (tq, Sk), 1)
    vlen = vlen_ref[bh]
    scores = jnp.where(col < vlen, scores, jnp.float32(-1e6))

    m = jnp.max(scores, axis=-1, keepdims=True)
    e = jnp.exp(scores - m)
    attn = e / jnp.sum(e, axis=-1, keepdims=True)

    # content output: attn @ v
    out = jnp.dot(attn, v, preferred_element_type=jnp.float32)  # (tq, Dh)
    # relative-position output: sum_j attn[i,j] * pos_v[i,j,d]
    out = out + jnp.sum(attn[:, :, None] * pv, axis=1)
    o_ref[0] = out.astype(o_ref.dtype)


def attention_with_rpr(q, k, v, pos_k, pos_v, valid_lens_bh, *, tq_max=256):
    BH, Sq, Dh = q.shape
    Sk = k.shape[1]
    tq = Sq if Sq <= tq_max else tq_max        # tq_max is a multiple of 8
    grid_q = pl.cdiv(Sq, tq)
    kernel = partial(_attn_rpr_kernel, scale=1.0 / math.sqrt(Dh))
    return pl.pallas_call(
        kernel,
        out_shape=jax.ShapeDtypeStruct((BH, Sq, Dh), q.dtype),
        grid_spec=pltpu.PrefetchScalarGridSpec(
            num_scalar_prefetch=1,             # valid_lens -> SMEM
            grid=(grid_q, BH),                 # inner loop over batch*head
            in_specs=[
                pl.BlockSpec((1, tq, Dh), lambda qi, bh, vl: (bh, qi, 0)),
                pl.BlockSpec((1, Sk, Dh), lambda qi, bh, vl: (bh, 0, 0)),
                pl.BlockSpec((1, Sk, Dh), lambda qi, bh, vl: (bh, 0, 0)),
                # pos tables depend only on the q tile -> fetched once per qi,
                # resident across the inner bh loop.
                pl.BlockSpec((tq, Sk, Dh), lambda qi, bh, vl: (qi, 0, 0)),
                pl.BlockSpec((tq, Sk, Dh), lambda qi, bh, vl: (qi, 0, 0)),
            ],
            out_specs=pl.BlockSpec((1, tq, Dh), lambda qi, bh, vl: (bh, qi, 0)),
        ),
        compiler_params=pltpu.CompilerParams(
            dimension_semantics=("parallel", "parallel")
        ),
    )(valid_lens_bh, q, k, v, pos_k, pos_v)


# ---------------------------------------------------------------------------
# Full forward (matches MultiHeadAttentionWithRPR.forward, bias=False).
# ---------------------------------------------------------------------------
def multihead_attention_rpr_forward(queries, keys, values, valid_lens, params,
                                    *, num_heads, clipping_distance):
    Wq, Wk, Wv, Wo = params["W_q"], params["W_k"], params["W_v"], params["W_o"]
    emb_k, emb_v = params["rel_k"], params["rel_v"]
    H = num_heads
    B, Sq, _ = queries.shape
    Sk = keys.shape[1]
    Dm = Wq.shape[1]
    Dh = Dm // H

    # projections (Pallas matmul kernels); weights stored (in_features, out_features)
    q = linear(queries.reshape(B * Sq, -1), Wq).reshape(B, Sq, Dm)
    k = linear(keys.reshape(B * Sk, -1), Wk).reshape(B, Sk, Dm)
    v = linear(values.reshape(B * Sk, -1), Wv).reshape(B, Sk, Dm)

    def split_heads(x):  # transpose_qkv
        Bx, S, _ = x.shape
        return x.reshape(Bx, S, H, Dh).transpose(0, 2, 1, 3).reshape(Bx * H, S, Dh)

    qh, kh, vh = split_heads(q), split_heads(k), split_heads(v)

    # relative-position embedding lookup (glue: tiny table gather)
    dist = jnp.arange(Sk)[None, :] - jnp.arange(Sq)[:, None]
    dist = jnp.clip(dist, -clipping_distance, clipping_distance) + clipping_distance
    pos_k = emb_k[dist]                      # (Sq, Sk, Dh)
    pos_v = emb_v[dist]                      # (Sq, Sk, Dh)

    if valid_lens is None:
        vlen_bh = jnp.full((B * H,), Sk, dtype=jnp.int32)
    else:
        vlen_bh = jnp.repeat(valid_lens.astype(jnp.int32), H)

    out = attention_with_rpr(qh, kh, vh, pos_k, pos_v, vlen_bh)   # (B*H, Sq, Dh)

    # transpose_output + final projection
    out = out.reshape(B, H, Sq, Dh).transpose(0, 2, 1, 3).reshape(B, Sq, Dm)
    return linear(out.reshape(B * Sq, Dm), Wo).reshape(B, Sq, Dm)


# ---------------------------------------------------------------------------
# Pure-JAX reference (mirrors the PyTorch math exactly, eval mode).
# ---------------------------------------------------------------------------
def reference_forward(queries, keys, values, valid_lens, params,
                      *, num_heads, clipping_distance):
    Wq, Wk, Wv, Wo = params["W_q"], params["W_k"], params["W_v"], params["W_o"]
    emb_k, emb_v = params["rel_k"], params["rel_v"]
    H = num_heads
    B, Sq, _ = queries.shape
    Sk = keys.shape[1]
    Dm = Wq.shape[1]
    Dh = Dm // H

    def split_heads(x):
        return (x.reshape(x.shape[0], x.shape[1], H, Dh)
                 .transpose(0, 2, 1, 3).reshape(-1, x.shape[1], Dh))

    q = split_heads(queries @ Wq)
    k = split_heads(keys @ Wk)
    v = split_heads(values @ Wv)

    dist = jnp.clip(jnp.arange(Sk)[None, :] - jnp.arange(Sq)[:, None],
                    -clipping_distance, clipping_distance) + clipping_distance
    pos_k, pos_v = emb_k[dist], emb_v[dist]

    scores = jnp.einsum("bqd,bkd->bqk", q, k) + jnp.einsum("bqd,qkd->bqk", q, pos_k)
    scores = scores / math.sqrt(Dh)
    if valid_lens is not None:
        vl = jnp.repeat(valid_lens, H)
        mask = jnp.arange(Sk)[None, None, :] < vl[:, None, None]
        scores = jnp.where(mask, scores, -1e6)
    attn = jax.nn.softmax(scores, axis=-1)
    out = jnp.einsum("bqk,bkd->bqd", attn, v) + jnp.einsum("bqk,qkd->bqd", attn, pos_v)
    out = out.reshape(B, H, Sq, Dh).transpose(0, 2, 1, 3).reshape(B, Sq, Dm)
    return out @ Wo


if __name__ == "__main__":
    B, S, Dm, H, clip_dist = 2, 8, 32, 4, 4
    Dh = Dm // H

    key = jax.random.PRNGKey(0)
    ks = jax.random.split(key, 9)
    queries = jax.random.normal(ks[0], (B, S, Dm), jnp.float32)
    keys_in = jax.random.normal(ks[1], (B, S, Dm), jnp.float32)
    values = jax.random.normal(ks[2], (B, S, Dm), jnp.float32)
    params = {
        "W_q": jax.random.normal(ks[3], (Dm, Dm), jnp.float32) / math.sqrt(Dm),
        "W_k": jax.random.normal(ks[4], (Dm, Dm), jnp.float32) / math.sqrt(Dm),
        "W_v": jax.random.normal(ks[5], (Dm, Dm), jnp.float32) / math.sqrt(Dm),
        "W_o": jax.random.normal(ks[6], (Dm, Dm), jnp.float32) / math.sqrt(Dm),
        "rel_k": jax.random.normal(ks[7], (2 * clip_dist + 1, Dh), jnp.float32),
        "rel_v": jax.random.normal(ks[8], (2 * clip_dist + 1, Dh), jnp.float32),
    }
    valid_lens = jnp.array([5, 8], dtype=jnp.int32)   # exercise the mask path

    out = multihead_attention_rpr_forward(
        queries, keys_in, values, valid_lens, params,
        num_heads=H, clipping_distance=clip_dist)
    out = jax.block_until_ready(out)

    ref = reference_forward(
        queries, keys_in, values, valid_lens, params,
        num_heads=H, clipping_distance=clip_dist)

    assert out.shape == (B, S, Dm)
    max_diff = jnp.max(jnp.abs(out - ref))
    assert jnp.allclose(out, ref, atol=1e-4, rtol=1e-4), f"max abs diff {max_diff}"

    print("KERNEL_OK")
</pallas_src>

<mosaic_0001>
module attributes {stable_mosaic.version = 11 : i64} {
  func.func @_linear_kernel(%arg0: i32, %arg1: memref<16x32xf32, #tpu.memory_space<vmem>>, %arg2: memref<32x32xf32, #tpu.memory_space<vmem>>, %arg3: memref<16x32xf32, #tpu.memory_space<vmem>>) attributes {dimension_semantics = [#tpu.dimension_semantics<parallel>], iteration_bounds = array<i64: 1>, scalar_prefetch = 0 : i64, scratch_operands = 0 : i64, tpu.core_type = #tpu.core_type<tc>, window_params = [{transform_indices = @transform_0, window_bounds = array<i64: 16, 32>}, {pipeline_mode = #tpu.pipeline_mode<synchronous>, transform_indices = @transform_1, window_bounds = array<i64: 32, 32>}, {transform_indices = @transform_2, window_bounds = array<i64: 16, 32>}]} {
    %c0 = arith.constant 0 : index
    %c0_0 = arith.constant 0 : index
    %0 = vector.load %arg1[%c0, %c0_0] : memref<16x32xf32, #tpu.memory_space<vmem>>, vector<16x32xf32>
    %c0_1 = arith.constant 0 : index
    %c0_2 = arith.constant 0 : index
    %1 = vector.load %arg2[%c0_1, %c0_2] : memref<32x32xf32, #tpu.memory_space<vmem>>, vector<32x32xf32>
    %cst = arith.constant dense<0.000000e+00> : vector<16x32xf32>
    %2 = tpu.matmul %0, %1, %cst {dimension_numbers = #tpu.dot_dimension_numbers<[1], [0], [0], [1], [0, 0, 1, 1], [], []>} : vector<16x32xf32>, vector<32x32xf32>, vector<16x32xf32> -> vector<16x32xf32>
    %c0_3 = arith.constant 0 : index
    %c0_4 = arith.constant 0 : index
    %3 = vector.load %arg3[%c0_3, %c0_4] : memref<16x32xf32, #tpu.memory_space<vmem>>, vector<16x32xf32>
    tpu.vector_store %arg3[%c0_3, %c0_4], %2 {strides = array<i32>} : memref<16x32xf32, #tpu.memory_space<vmem>>, vector<16x32xf32>,
    return
  }
  func.func @transform_0(%arg0: i32) -> (i32, i32) {
    %c0_i32 = arith.constant 0 : i32
    %c0_i32_0 = arith.constant 0 : i32
    return %arg0, %c0_i32 : i32, i32
  }
  func.func @transform_1(%arg0: i32) -> (i32, i32) {
    %c0_i32 = arith.constant 0 : i32
    %c0_i32_0 = arith.constant 0 : i32
    %c0_i32_1 = arith.constant 0 : i32
    return %c0_i32, %c0_i32_0 : i32, i32
  }
  func.func @transform_2(%arg0: i32) -> (i32, i32) {
    %c0_i32 = arith.constant 0 : i32
    %c0_i32_0 = arith.constant 0 : i32
    return %arg0, %c0_i32 : i32, i32
  }
}

</mosaic_0001>

<llo_original>
// kernel: tpu_custom_call.1
$region0: #{tpu_custom_call.1}
  #allocation0 [shape = 'u32[]', space=smem, size = 0x4, offset = 0x4, fixed_abs, tag = 'smem constant byte address 0x4 - core index']
  #allocation1 [shape = 'u32[144,128]{1,0:T(1,128)}', space=vmem, size = 0x12000, scoped, tag = 'internal scratch']
  %s0 = inlined_call_operand.hbm [shape: f32[16,32], index: 0, kind: input, shape index: {}]
  %s1 = inlined_call_operand.hbm [shape: f32[32,32], index: 1, kind: input, shape index: {}]
  %s2 = inlined_call_operand.hbm [shape: f32[16,32], index: 2, kind: output, shape index: {}]
  %s3 = sld [smem:[#allocation0]]
  $region26: #{tpu_custom_call.1} parent=0
    _
  %s5 = ssub.s32 1, %s3
  %s6 = scalar_select 0, %s5, %s3
  $region1: #{tpu_custom_call.1} parent=0
    #allocation2 [shape = 'u8[8192]{0}', space=vmem, size = 0x2000, scoped, tag = 'input window, operand 0, single buffered']
    #allocation3 [shape = 's32[1]{0}', space=sflag, size = 0x4, scoped, tag = 'scoped memory for tpu_custom_call.1']
    #allocation4 [shape = 's32[1]{0}', space=sflag, size = 0x4, scoped, tag = 'scoped memory for tpu_custom_call.1']
    #allocation5 [shape = 'u8[16384]{0}', space=vmem, size = 0x4000, scoped, tag = 'input window, operand 1, single buffered']
    #allocation6 [shape = 's32[1]{0}', space=sflag, size = 0x4, scoped, tag = 'scoped memory for tpu_custom_call.1']
    #allocation7 [shape = 'u8[8192]{0}', space=vmem, size = 0x2000, scoped, tag = 'output window, operand 0, single buffered']
    %7 = vsyncpa [#allocation3], 0
    %8 = vsyncpa [#allocation6], 0
    %9 = vsyncpa [#allocation4], 0
    // Predicated region
    $region2: #{tpu_custom_call.1} parent=1 // pred_check
      _
    $region3: #{tpu_custom_call.1} parent=1 // pred_check_branch
      %11 = sbr.rel (0) target = $region5
    $region4: #{tpu_custom_call.1} parent=1 // pred_region
      %s13 = ssub.s32 256, 256
      %14 = vsyncadd [#allocation3], %s13
      %s15 = sshll.u32 [#allocation2], 4
      %s16 = int_to_ptr.vmem [resolvable:$true] %s15
      %21 = dma.hbm_to_vmem [thread:$0]  %s0, 256, %s16, [#allocation3], 128, 128, 8
    $region5: #{tpu_custom_call.1} parent=1 // pred_fallthru
      _
    // Predicated region
    $region6: #{tpu_custom_call.1} parent=1 // pred_check
      _
    $region7: #{tpu_custom_call.1} parent=1 // pred_check_branch
      %23 = sbr.rel (0) target = $region9
    $region8: #{tpu_custom_call.1} parent=1 // pred_region
      %s25 = ssub.s32 512, 512
      %26 = vsyncadd [#allocation6], %s25
      %s27 = sshll.u32 [#allocation5], 4
      %s28 = int_to_ptr.vmem [resolvable:$true] %s27
      %33 = dma.hbm_to_vmem [thread:$0]  %s1, 512, %s28, [#allocation6], 128, 128, 8
    $region9: #{tpu_custom_call.1} parent=1 // pred_fallthru
      _
    // Predicated region
    $region10: #{tpu_custom_call.1} parent=1 // pred_check
      _
    $region11: #{tpu_custom_call.1} parent=1 // pred_check_branch
      %35 = sbr.rel (0) target = $region13
    $region12: #{tpu_custom_call.1} parent=1 // pred_region
      %36 = dma.done [#allocation3], 256
    $region13: #{tpu_custom_call.1} parent=1 // pred_fallthru
      _
    // Predicated region
    $region14: #{tpu_custom_call.1} parent=1 // pred_check
      _
    $region15: #{tpu_custom_call.1} parent=1 // pred_check_branch
      %38 = sbr.rel (0) target = $region17
    $region16: #{tpu_custom_call.1} parent=1 // pred_region
      %39 = dma.done [#allocation6], 512
    $region17: #{tpu_custom_call.1} parent=1 // pred_fallthru
      _
    %v40 = vld [vmem:[#allocation2] sm:$0xff]
    %v41 = vld [vmem:[#allocation2 + $0x8] sm:$0xff]
    %v42 = vld [vmem:[#allocation5] sm:$0xff]
    %v43 = vld [vmem:[#allocation5 + $0x8] sm:$0xff]
    %v44 = vld [vmem:[#allocation5 + $0x10] sm:$0xff]
    %v45 = vld [vmem:[#allocation5 + $0x18] sm:$0xff]
    %vm46 = vcmask 261120
    %v48 = vsel %vm46, %v40, 0
    %v51 = vsel %vm46, %v41, 0
    %53 = vmatprep.subr.mxu0 0.0
    %54 = vmatpush1.msra.mxu0 0.0
    %55 = vmatprep.subr.mxu0 0.0
    %56 = vmatpush1.msra.mxu0 0.0
    %57 = vmatprep.subr.mxu0 0.0
    %58 = vmatpush1.msra.mxu0 0.0
    %59 = vmatprep.subr.mxu0 0.0
    %60 = vmatpush1.msra.mxu0 0.0
    %61 = vmatprep.subr.mxu0 0.0
    %62 = vmatpush1.msra.mxu0 0.0
    %63 = vmatprep.subr.mxu0 0.0
    %64 = vmatpush1.msra.mxu0 0.0
    %65 = vmatprep.subr.mxu0 0.0
    %66 = vmatpush1.msra.mxu0 0.0
    %67 = vmatprep.subr.mxu0 0.0
    %68 = vmatpush1.msra.mxu0 0.0
    %69 = vmatprep.subr.mxu0 0.0
    %70 = vmatpush1.msra.mxu0 0.0
    %71 = vmatprep.subr.mxu0 0.0
    %72 = vmatpush1.msra.mxu0 0.0
    %73 = vmatprep.subr.mxu0 0.0
    %74 = vmatpush1.msra.mxu0 0.0
    %75 = vmatprep.subr.mxu0 0.0
    %76 = vmatpush1.msra.mxu0 0.0
    %77 = vmatprep.subr.mxu0 0.0
    %78 = vmatpush1.msra.mxu0 %v45
    %79 = vmatprep.subr.mxu0 0.0
    %80 = vmatpush1.msra.mxu0 %v44
    %81 = vmatprep.subr.mxu0 0.0
    %82 = vmatpush1.msra.mxu0 %v43
    %83 = vmatprep.subr.mxu0 0.0
    %84 = vmatpush1.msra.mxu0 %v42
    %85 = vmatprep.subr.mxu0 0.0
    %86 = vmatpush2.msra.mxu0 0.0
    %87 = vmatprep.subr.mxu0 0.0
    %88 = vmatpush2.msra.mxu0 0.0
    %89 = vmatprep.subr.mxu0 0.0
    %90 = vmatpush2.msra.mxu0 0.0
    %91 = vmatprep.subr.mxu0 0.0
    %92 = vmatpush2.msra.mxu0 0.0
    %93 = vmatprep.subr.mxu0 0.0
    %94 = vmatpush2.msra.mxu0 0.0
    %95 = vmatprep.subr.mxu0 0.0
    %96 = vmatpush2.msra.mxu0 0.0
    %97 = vmatprep.subr.mxu0 0.0
    %98 = vmatpush2.msra.mxu0 0.0
    %99 = vmatprep.subr.mxu0 0.0
    %100 = vmatpush2.msra.mxu0 0.0
    %101 = vmatprep.subr.mxu0 0.0
    %102 = vmatpush2.msra.mxu0 0.0
    %103 = vmatprep.subr.mxu0 0.0
    %104 = vmatpush2.msra.mxu0 0.0
    %105 = vmatprep.subr.mxu0 0.0
    %106 = vmatpush2.msra.mxu0 0.0
    %107 = vmatprep.subr.mxu0 0.0
    %108 = vmatpush2.msra.mxu0 0.0
    %109 = vmatprep.subr.mxu0 0.0
    %110 = vmatpush2.msra.mxu0 0.0
    %111 = vmatprep.subr.mxu0 0.0
    %112 = vmatpush2.msra.mxu0 0.0
    %113 = vmatprep.subr.mxu0 0.0
    %114 = vmatpush2.msra.mxu0 0.0
    %115 = vmatprep.subr.mxu0 0.0
    %116 = vmatpush2.msra.mxu0 0.0
    %117 = vmatprep.mubr.f32.mxu0 0.0
    %118 = vmatmul.mubr.f32.gmra.mxu0 %v48
    %v119 = vpop.f32.mrf.mxu0
    %v120 = vadd.f32 0.0, %v119
    %v121 = vpop.f32.mrf.mxu0
    %122 = vmatprep.mubr.f32.mxu0 0.0
    %123 = vmatmul.mubr.f32.gmra.mxu0 %v51
    %v124 = vpop.f32.mrf.mxu0
    %v125 = vadd.f32 0.0, %v124
    %v126 = vpop.f32.mrf.mxu0
    %127 = vdwg.mxu0
    %128 = vst.msk [vmem:[#allocation7] sm:$0xff] %vm46, %v120
    %129 = vst.msk [vmem:[#allocation7 + $0x8] sm:$0xff] %vm46, %v125
    // Predicated region
    $region18: #{tpu_custom_call.1} parent=1 // pred_check
      _
    $region19: #{tpu_custom_call.1} parent=1 // pred_check_branch
      %131 = sbr.rel (0) target = $region21
    $region20: #{tpu_custom_call.1} parent=1 // pred_region
      %s133 = ssub.s32 256, 256
      %134 = vsyncadd [#allocation4], %s133
      %s135 = sshll.u32 [#allocation7], 4
      %s136 = int_to_ptr.vmem [resolvable:$true] %s135
      %141 = dma.vmem_to_hbm [thread:$0]  %s136, 256, %s2, [#allocation4], 128, 128, 8
    $region21: #{tpu_custom_call.1} parent=1 // pred_fallthru
      _
    // Predicated region
    $region22: #{tpu_custom_call.1} parent=1 // pred_check
      _
    $region23: #{tpu_custom_call.1} parent=1 // pred_check_branch
      %143 = sbr.rel (0) target = $region25
    $region24: #{tpu_custom_call.1} parent=1 // pred_region
      %144 = dma.done [#allocation4], 256
    $region25: #{tpu_custom_call.1} parent=1 // pred_fallthru
      _
    %145 = vsyncpa [#allocation3], 1
    %146 = vsyncpa [#allocation6], 1
    %147 = vsyncpa [#allocation4], 1

</llo_original>
